<compile_context>
chip_gen: v5e
topology: v5e:2x2
jax: 0.10.0
libtpu: 0.0.40
codegen_flags: <defaults>
</compile_context>

<pallas_src>
import functools

import jax
import jax.numpy as jnp
from jax.experimental import pallas as pl
from jax.experimental.pallas import tpu as pltpu


def _narrow_dma_kernel(x_hbm, o_hbm, sem, *, start, length):
    # Single contiguous HBM->HBM copy of rows [start, start+length).
    cp = pltpu.make_async_copy(x_hbm.at[pl.ds(start, length), :], o_hbm, sem)
    cp.start()
    cp.wait()


def narrow_dim0(x, *, start=0, length=2):
    """Equivalent of torch.ops.aten.narrow(x, dim=0, start=0, length=2) for 2-D x."""
    R, C = x.shape
    assert 0 <= start and start + length <= R, "narrow window out of range"

    dtype_bytes = jnp.dtype(x.dtype).itemsize
    kernel = functools.partial(_narrow_dma_kernel, start=start, length=length)

    out = pl.pallas_call(
        kernel,
        out_shape=jax.ShapeDtypeStruct((length, C), x.dtype),
        in_specs=[pl.BlockSpec(memory_space=pl.ANY)],   # raw HBM ref, no auto-DMA
        out_specs=pl.BlockSpec(memory_space=pl.ANY),    # raw HBM ref, written by DMA
        scratch_shapes=[pltpu.SemaphoreType.DMA(())],
        cost_estimate=pl.CostEstimate(
            flops=0,
            transcendentals=0,
            bytes_accessed=2 * length * C * dtype_bytes,  # read + write of the window
        ),
    )(x)
    return out


if __name__ == "__main__":
    key = jax.random.PRNGKey(0)
    # [-1, -1] float32 input; R > 2 so the narrow is a proper strict slice.
    x = jax.random.normal(key, (16, 128), dtype=jnp.float32)

    y = narrow_dim0(x, start=0, length=2)
    jax.block_until_ready(y)

    # Reference: aten.narrow(x, 0, 0, 2) == x[0:2, :]
    ref = x[0:2, :]
    assert y.shape == ref.shape and y.dtype == ref.dtype
    assert jnp.array_equal(y, ref)

    print("KERNEL_OK")
</pallas_src>

<mosaic_0001>
module attributes {stable_mosaic.version = 11 : i64} {
  func.func @_narrow_dma_kernel(%arg0: memref<16x128xf32, #tpu.memory_space<any>>, %arg1: memref<2x128xf32, #tpu.memory_space<any>>, %arg2: memref<!tpu.dma_semaphore, #tpu.memory_space<semaphore_mem>>) attributes {dimension_semantics = [], scalar_prefetch = 0 : i64, scratch_operands = 1 : i64, tpu.core_type = #tpu.core_type<tc>} {
    %c0_i32 = arith.constant 0 : i32
    %c0_i32_0 = arith.constant 0 : i32
    %0 = tpu.memref_slice %arg0[%c0_i32, %c0_i32_0] : memref<16x128xf32, #tpu.memory_space<any>> -> memref<2x128xf32, #tpu.memory_space<any>>
    tpu.enqueue_dma source(%0 : memref<2x128xf32, #tpu.memory_space<any>>) target(%arg1 : memref<2x128xf32, #tpu.memory_space<any>>) target_semaphore(%arg2 : memref<!tpu.dma_semaphore, #tpu.memory_space<semaphore_mem>>)
    %c0_i32_1 = arith.constant 0 : i32
    %c0_i32_2 = arith.constant 0 : i32
    %1 = tpu.memref_slice %arg0[%c0_i32_1, %c0_i32_2] : memref<16x128xf32, #tpu.memory_space<any>> -> memref<2x128xf32, #tpu.memory_space<any>>
    tpu.wait_dma2 semaphore(%arg2 : memref<!tpu.dma_semaphore, #tpu.memory_space<semaphore_mem>>) src(%1 : memref<2x128xf32, #tpu.memory_space<any>>) dst(%arg1 : memref<2x128xf32, #tpu.memory_space<any>>)
    return
  }
}

</mosaic_0001>

<llo_original>
// kernel: tpu_custom_call.1
$region0: #{tpu_custom_call.1}
  #allocation0 [shape = 'u32[]', space=smem, size = 0x4, offset = 0x4, fixed_abs, tag = 'smem constant byte address 0x4 - core index']
  #allocation1 [shape = 'u32[72,128]{1,0:T(1,128)}', space=vmem, size = 0x9000, scoped, tag = 'internal scratch']
  #allocation2 [shape = 's32[1]{0}', space=sflag, size = 0x4, scoped, tag = 'scratch operand']
  #allocation3 [shape = 's32[]', space=sflag, size = 0x4, offset = 0, fixed_abs, tag = 'sflag constant byte address 0x0 - dummy sync flag']
  #allocation4 [shape = 'u32[0]{0}', space=smem, size = 0, offset = 0, fixed_abs, tag = 'smem constant byte address 0x0 - null']
  %s0 = inlined_call_operand.hbm [shape: f32[16,128], index: 0, kind: input, shape index: {}]
  %s1 = inlined_call_operand.hbm [shape: f32[2,128], index: 1, kind: output, shape index: {}]
  %s2 = sld [smem:[#allocation0]]
  $region2: #{tpu_custom_call.1} parent=0
    _
  %s4 = ssub.s32 1, %s2
  %s5 = scalar_select 0, %s4, %s2
  %s7 = sshll.u32 1, 14
  %s8 = sxor.u32 4294967295, %s7
  %s10 = sshll.u32 %s0, 4
  %s11 = int_to_ptr.hbm [resolvable:$true] %s10
  %s12 = sshll.u32 %s1, 4
  %s13 = int_to_ptr.hbm [resolvable:$true] %s12
  %16 = dma.general %s11, 32, %s13, [#allocation2], [#allocation3], [#allocation4], 0, 0
  %s17 = smul.u32 2, 1
  %s18 = sshll.u32 %s17, 4
  %19 = dma.done [#allocation2], %s18
  %20 = vsyncmov [#allocation2]
  %s21 = vpop.sfrf %20
  %p22 = scmp.eq.s32.totalorder %s21, 0
  %p23 = pneg %p22
  %25 = shalt.err (%p23)

</llo_original>
